<compile_context>
chip_gen: v6e
topology: v6e:2x2x1
jax: 0.10.0
libtpu: 0.0.40
codegen_flags: <defaults>
</compile_context>

<pallas_src>
import functools
import math

import jax
import jax.numpy as jnp
from jax.experimental import pallas as pl
from jax.experimental.pallas import tpu as pltpu


# ------------------------------- helpers ----------------------------------- #

def _round_up(x, m):
    return (x + m - 1) // m * m


def _vmem_limit_bytes():
    """Generation-aware VMEM limit with headroom below physical capacity
    (128 MiB on v5e/v6e, 64 MiB per TensorCore on v7x)."""
    cap = 64 << 20
    try:
        info = pltpu.get_tpu_info()
        cap = int(getattr(info, "vmem_capacity_bytes", cap) or cap)
    except Exception:
        pass
    return max(32 << 20, min(int(cap * 0.75), cap - (8 << 20)))


def _choose_mask_group(m, n_pad, vmem_limit):
    """Largest divisor of m whose Gram-sized VMEM residents (f32 accumulator
    + double-buffered target/output block per mask) fit in half the VMEM
    limit, so features are re-streamed from HBM as few times as possible."""
    per_mask = 3 * n_pad * n_pad * 4
    for mg in range(m, 0, -1):
        if m % mg == 0 and mg * per_mask <= vmem_limit // 2:
            return mg
    return 1


def _choose_k_tile(n_pad, batch, mg, k, bytes_feat, budget_bytes):
    """Largest multiple-of-128 K tile whose streamed VMEM footprint
    (double-buffered feature + mask tiles plus the masked-feature staging
    buffer) stays under `budget_bytes` (dtype-aware)."""
    per_k = 3 * n_pad * bytes_feat + 2 * mg * batch * 4
    tk_cap = max(128, (budget_bytes // per_k) // 128 * 128)
    k128 = _round_up(k, 128)
    if k128 <= tk_cap:
        return k128
    n_tiles = -(-k128 // tk_cap)
    return _round_up(-(-k128 // n_tiles), 128)


# ----------------------------- Pallas kernels ------------------------------ #

def _masked_gram_accumulate(feat_ref, mask_ref, acc_ref, fbuf_ref, *,
                            channels, batch, n_valid, mg, mm_dtype):
    """One K-tile: for each mask of the group, expand the per-batch mask over
    channels via a static (mask, batch) loop (sublane broadcast multiply, no
    iota / expansion matmul), stage the masked features in `fbuf_ref`, and
    accumulate the Gram on the MXU."""
    n_pad, tk = feat_ref.shape

    if n_pad > n_valid:  # padded N rows stay exactly zero
        fbuf_ref[n_valid:, :] = jnp.zeros((n_pad - n_valid, tk), mm_dtype)

    feat = feat_ref[...]                                  # one VMEM load, reused per mask
    for mi in range(mg):
        m2d = mask_ref[mi]                                # (B, tk) f32, 1/sqrt(N*K) folded in
        for b in range(batch):
            lo = b * channels
            blk = feat[lo:lo + channels, :].astype(jnp.float32) * m2d[b:b + 1, :]
            fbuf_ref[lo:lo + channels, :] = blk.astype(mm_dtype)
        f = fbuf_ref[...]
        # Gram: contract K on both operands — no transpose materialized.
        acc_ref[mi] = acc_ref[mi] + jax.lax.dot_general(
            f, f, (((1,), (1,)), ((), ())), preferred_element_type=jnp.float32)


def _gram_kernel(feat_ref, mask_ref, gram_ref, acc_ref, fbuf_ref, *,
                 channels, batch, n_valid, mg, mm_dtype):
    """Masked Gram matrices (targets): grid = (mask_group, K-tile)."""
    k = pl.program_id(1)

    @pl.when(k == 0)
    def _init():
        acc_ref[...] = jnp.zeros_like(acc_ref)

    _masked_gram_accumulate(feat_ref, mask_ref, acc_ref, fbuf_ref,
                            channels=channels, batch=batch, n_valid=n_valid,
                            mg=mg, mm_dtype=mm_dtype)

    @pl.when(k == pl.num_programs(1) - 1)
    def _finish():
        gram_ref[...] = acc_ref[...]


def _loss_kernel(feat_ref, mask_ref, target_ref, loss_ref, acc_ref, fbuf_ref, *,
                 channels, batch, n_valid, mg, mm_dtype, inv_nn):
    """Masked Grams + MSE vs. target Grams; epilogue only on the last K step."""
    k = pl.program_id(1)

    @pl.when(k == 0)
    def _init():
        acc_ref[...] = jnp.zeros_like(acc_ref)

    _masked_gram_accumulate(feat_ref, mask_ref, acc_ref, fbuf_ref,
                            channels=channels, batch=batch, n_valid=n_valid,
                            mg=mg, mm_dtype=mm_dtype)

    @pl.when(k == pl.num_programs(1) - 1)
    def _finish():
        diff = acc_ref[...] - target_ref[...]       # zero on padded rows/cols
        partial = jnp.sum(diff * diff) * inv_nn     # sum over masks of mse_loss 'mean'
        loss_ref[...] = jnp.broadcast_to(partial, loss_ref.shape)


# ------------------------------ wrappers ----------------------------------- #

def masked_gram_matrices(features, masks, *, channels, batch, n_valid, mg,
                         k_tile, matmul_dtype, vmem_limit):
    """features: (N_pad, K_pad) mm_dtype; masks: (M, B, K_pad) f32 (scaled)
    -> (M, N_pad, N_pad) f32 Gram matrices."""
    n_pad, k_pad = features.shape
    m = masks.shape[0]
    assert k_pad % k_tile == 0, "k_pad must be a multiple of k_tile"
    assert m % mg == 0, "mask count must be a multiple of the group size"
    groups, nk = m // mg, k_pad // k_tile
    bytes_f = jnp.dtype(matmul_dtype).itemsize
    kernel = functools.partial(_gram_kernel, channels=channels, batch=batch,
                               n_valid=n_valid, mg=mg, mm_dtype=matmul_dtype)
    return pl.pallas_call(
        kernel,
        out_shape=jax.ShapeDtypeStruct((m, n_pad, n_pad), jnp.float32),
        grid_spec=pltpu.PrefetchScalarGridSpec(
            num_scalar_prefetch=0,
            grid=(groups, nk),
            in_specs=[
                pl.BlockSpec((n_pad, k_tile), lambda g, k: (0, k)),
                pl.BlockSpec((mg, batch, k_tile), lambda g, k: (g, 0, k)),
            ],
            out_specs=pl.BlockSpec((mg, n_pad, n_pad), lambda g, k: (g, 0, 0)),
            scratch_shapes=[pltpu.VMEM((mg, n_pad, n_pad), jnp.float32),
                            pltpu.VMEM((n_pad, k_tile), matmul_dtype)],
        ),
        compiler_params=pltpu.CompilerParams(
            dimension_semantics=("parallel", "arbitrary"),
            vmem_limit_bytes=vmem_limit),
        cost_estimate=pl.CostEstimate(
            flops=2 * m * n_pad * n_pad * k_pad,
            transcendentals=0,
            bytes_accessed=(groups * n_pad * k_pad * bytes_f
                            + 4 * m * batch * k_pad
                            + 4 * m * n_pad * n_pad)),
    )(features, masks)


def augmented_style_loss(features, masks, targets, alpha12, *, channels, batch,
                         n_valid, mg, k_tile, matmul_dtype, vmem_limit):
    """features: (N_pad, K_pad); masks: (M, B, K_pad); targets: (M, N_pad, N_pad)."""
    n_pad, k_pad = features.shape
    m = masks.shape[0]
    assert k_pad % k_tile == 0, "k_pad must be a multiple of k_tile"
    assert m % mg == 0, "mask count must be a multiple of the group size"
    groups, nk = m // mg, k_pad // k_tile
    inv_nn = 1.0 / float(n_valid * n_valid)
    bytes_f = jnp.dtype(matmul_dtype).itemsize
    kernel = functools.partial(_loss_kernel, channels=channels, batch=batch,
                               n_valid=n_valid, mg=mg, mm_dtype=matmul_dtype,
                               inv_nn=inv_nn)
    # TODO(synk): when groups == 1 on v7x, one TensorCore idles; a second
    # parallel axis (Gram row-blocks) would recover megacore occupancy.
    partials = pl.pallas_call(
        kernel,
        out_shape=jax.ShapeDtypeStruct((groups, 1, 128), jnp.float32),
        grid_spec=pltpu.PrefetchScalarGridSpec(
            num_scalar_prefetch=0,
            grid=(groups, nk),
            in_specs=[
                pl.BlockSpec((n_pad, k_tile), lambda g, k: (0, k)),
                pl.BlockSpec((mg, batch, k_tile), lambda g, k: (g, 0, k)),
                pl.BlockSpec((mg, n_pad, n_pad), lambda g, k: (g, 0, 0)),
            ],
            out_specs=pl.BlockSpec((1, 1, 128), lambda g, k: (g, 0, 0)),
            scratch_shapes=[pltpu.VMEM((mg, n_pad, n_pad), jnp.float32),
                            pltpu.VMEM((n_pad, k_tile), matmul_dtype)],
        ),
        compiler_params=pltpu.CompilerParams(
            dimension_semantics=("parallel", "arbitrary"),
            vmem_limit_bytes=vmem_limit),
        cost_estimate=pl.CostEstimate(
            flops=2 * m * n_pad * n_pad * k_pad,
            transcendentals=0,
            bytes_accessed=(groups * n_pad * k_pad * bytes_f
                            + 4 * m * batch * k_pad
                            + 4 * m * n_pad * n_pad
                            + 4 * groups * 128)),
    )(features, masks, targets)
    return jnp.float32(alpha12) * jnp.sum(partials[:, 0, 0])


class AugmentedStyleLossPallas:
    """JAX/Pallas equivalent of the PyTorch AugmentedStyleLoss module."""

    def __init__(self, target_feature, target_masks, input_masks, alpha12,
                 matmul_dtype=jnp.bfloat16):
        bsz, ch, h, w = target_feature.shape
        self._bsz, self._ch = bsz, ch
        self._n = bsz * ch                                  # original N (normalizers)
        self._k = h * w                                     # original K
        self._n_pad = _round_up(self._n, 16)                # bf16 sublane packing
        self._mm_dtype = matmul_dtype
        self.alpha12 = float(alpha12)

        m_t = len(target_masks)
        self._m_loss = min(len(input_masks), m_t)

        self._vmem_limit = _vmem_limit_bytes()
        self._mg_t = _choose_mask_group(m_t, self._n_pad, self._vmem_limit)
        self._mg_l = _choose_mask_group(self._m_loss, self._n_pad, self._vmem_limit)
        mg_max = max(self._mg_t, self._mg_l)

        bytes_f = jnp.dtype(matmul_dtype).itemsize
        fixed = 3 * mg_max * self._n_pad * self._n_pad * 4   # acc + dbl-buffered target/out
        stream_budget = max(4 << 20, self._vmem_limit - fixed - (2 << 20))
        self._k_tile = _choose_k_tile(self._n_pad, bsz, mg_max, self._k,
                                      bytes_f, stream_budget)
        self._k_pad = _round_up(self._k, self._k_tile)
        self._scale = 1.0 / math.sqrt(float(self._n) * float(self._k))

        tfeat = self._prep_features(target_feature)
        tmasks = jnp.stack([self._prep_mask(mk) for mk in target_masks])
        self.input_masks = jnp.stack(
            [self._prep_mask(mk) for mk in input_masks[: self._m_loss]])
        # targets = gram_matrix(target_feature * mask), computed on-TPU (detached consts)
        self.targets = masked_gram_matrices(
            tfeat, tmasks, channels=ch, batch=bsz, n_valid=self._n,
            mg=self._mg_t, k_tile=self._k_tile, matmul_dtype=matmul_dtype,
            vmem_limit=self._vmem_limit)
        self.loss = None

    def _prep_features(self, x):
        bsz, ch, h, w = x.shape
        f = x.reshape(bsz * ch, h * w).astype(jnp.float32)
        f = jnp.pad(f, ((0, self._n_pad - bsz * ch), (0, self._k_pad - h * w)))
        return f.astype(self._mm_dtype)                      # bf16 in HBM on fast path

    def _prep_mask(self, mask):
        bsz = mask.shape[0]
        # NOT broadcast over channels; fold 1/sqrt(N*K) Gram normalization in here.
        m_ = mask.reshape(bsz, -1).astype(jnp.float32) * self._scale
        return jnp.pad(m_, ((0, 0), (0, self._k_pad - m_.shape[1])))

    def __call__(self, x):
        feat = self._prep_features(x)
        self.loss = augmented_style_loss(
            feat, self.input_masks, self.targets[: self._m_loss], self.alpha12,
            channels=self._ch, batch=self._bsz, n_valid=self._n,
            mg=self._mg_l, k_tile=self._k_tile, matmul_dtype=self._mm_dtype,
            vmem_limit=self._vmem_limit)
        return x   # identical to the PyTorch module: forward returns its input


# ------------------------------- reference --------------------------------- #

def _gram_ref(x):
    B, C, H, W = x.shape
    f = x.reshape(B * C, H * W)
    return (f @ f.T) / (B * C * H * W)


def _loss_ref(x, target_feature, target_masks, input_masks, alpha12):
    targets = [_gram_ref(target_feature * m) for m in target_masks]
    grams = [_gram_ref(x * m) for m in input_masks]
    return jnp.float32(alpha12) * sum(
        jnp.mean((g - t) ** 2) for g, t in zip(grams, targets)
    )


# --------------------------------- main ------------------------------------ #

if __name__ == "__main__":
    B, C, H, W = 2, 4, 16, 16
    num_masks = 2
    alpha12 = 0.5

    key = jax.random.PRNGKey(0)
    k_feat, k_tgt, k_m_in, k_m_tgt = jax.random.split(key, 4)

    x = jax.random.normal(k_feat, (B, C, H, W), dtype=jnp.float32)
    target_feature = jax.random.normal(k_tgt, (B, C, H, W), dtype=jnp.float32)

    km_in = jax.random.split(k_m_in, num_masks)
    km_tg = jax.random.split(k_m_tgt, num_masks)
    input_masks = [
        (jax.random.uniform(km_in[i], (B, 1, H, W)) > 0.5).astype(jnp.float32)
        for i in range(num_masks)
    ]
    target_masks = [
        (jax.random.uniform(km_tg[i], (B, 1, H, W)) > 0.5).astype(jnp.float32)
        for i in range(num_masks)
    ]

    ref = _loss_ref(x, target_feature, target_masks, input_masks, alpha12)

    # f32 MXU path: tight validation of the kernel semantics.
    mod_f32 = AugmentedStyleLossPallas(target_feature, target_masks, input_masks,
                                       alpha12, matmul_dtype=jnp.float32)
    out = jax.block_until_ready(mod_f32(x))
    loss_f32 = jax.block_until_ready(mod_f32.loss)
    assert out.shape == x.shape and jnp.allclose(out, x), "forward must return its input"
    assert jnp.allclose(loss_f32, ref, rtol=1e-4, atol=1e-6), (loss_f32, ref)

    # bf16 MXU path (fast path on v5e/v6e/v7x): looser tolerance vs f32 ref.
    mod_bf16 = AugmentedStyleLossPallas(target_feature, target_masks, input_masks,
                                        alpha12)
    _ = jax.block_until_ready(mod_bf16(x))
    loss_bf16 = jax.block_until_ready(mod_bf16.loss)
    assert jnp.allclose(loss_bf16, ref, rtol=5e-2, atol=1e-6), (loss_bf16, ref)

    print("KERNEL_OK")
</pallas_src>

<mosaic_0001>
module attributes {stable_mosaic.version = 11 : i64} {
  func.func @_gram_kernel(%arg0: i32, %arg1: i32, %arg2: memref<16x256xf32, #tpu.memory_space<vmem>>, %arg3: memref<2x2x256xf32, #tpu.memory_space<vmem>>, %arg4: memref<2x16x16xf32, #tpu.memory_space<vmem>>, %arg5: memref<2x16x16xf32, #tpu.memory_space<vmem>>, %arg6: memref<16x256xf32, #tpu.memory_space<vmem>>) attributes {dimension_semantics = [#tpu.dimension_semantics<parallel>, #tpu.dimension_semantics<arbitrary>], iteration_bounds = array<i64: 1, 1>, scalar_prefetch = 0 : i64, scratch_operands = 2 : i64, tpu.core_type = #tpu.core_type<tc>, window_params = [{transform_indices = @transform_0, window_bounds = array<i64: 16, 256>}, {transform_indices = @transform_1, window_bounds = array<i64: 2, 2, 256>}, {transform_indices = @transform_2, window_bounds = array<i64: 2, 16, 16>}]} {
    %c0_i32 = arith.constant 0 : i32
    %0 = arith.cmpi eq, %arg1, %c0_i32 : i32
    %1 = arith.extui %0 : i1 to i32
    %c0_i32_0 = arith.constant 0 : i32
    %2 = arith.cmpi ne, %1, %c0_i32_0 : i32
    scf.if %2 {
      %cst_35 = arith.constant 0.000000e+00 : f32
      %49 = vector.broadcast %cst_35 : f32 to vector<2x16x16xf32>
      %c0_36 = arith.constant 0 : index
      %c0_37 = arith.constant 0 : index
      %c0_38 = arith.constant 0 : index
      %50 = vector.load %arg5[%c0_36, %c0_37, %c0_38] : memref<2x16x16xf32, #tpu.memory_space<vmem>>, vector<2x16x16xf32>
      tpu.vector_store %arg5[%c0_36, %c0_37, %c0_38], %49 {strides = array<i32>} : memref<2x16x16xf32, #tpu.memory_space<vmem>>, vector<2x16x16xf32>,
    } else {
    }
    %cst = arith.constant 0.000000e+00 : f32
    %3 = vector.broadcast %cst : f32 to vector<8x256xf32>
    %c8 = arith.constant 8 : index
    %c0 = arith.constant 0 : index
    %4 = vector.load %arg6[%c8, %c0] : memref<16x256xf32, #tpu.memory_space<vmem>>, vector<8x256xf32>
    tpu.vector_store %arg6[%c8, %c0], %3 {strides = array<i32>} : memref<16x256xf32, #tpu.memory_space<vmem>>, vector<8x256xf32>,
    %c0_1 = arith.constant 0 : index
    %c0_2 = arith.constant 0 : index
    %5 = vector.load %arg2[%c0_1, %c0_2] : memref<16x256xf32, #tpu.memory_space<vmem>>, vector<16x256xf32>
    %c0_3 = arith.constant 0 : index
    %c0_4 = arith.constant 0 : index
    %c0_5 = arith.constant 0 : index
    %6 = vector.load %arg3[%c0_3, %c0_4, %c0_5] : memref<2x2x256xf32, #tpu.memory_space<vmem>>, vector<1x2x256xf32>
    %7 = vector.shape_cast %6 : vector<1x2x256xf32> to vector<2x256xf32>
    %8 = vector.extract_strided_slice %5 {offsets = [0, 0], sizes = [4, 256], strides = [1, 1]} : vector<16x256xf32> to vector<4x256xf32>
    %9 = vector.extract_strided_slice %7 {offsets = [0, 0], sizes = [1, 256], strides = [1, 1]} : vector<2x256xf32> to vector<1x256xf32>
    %10 = vector.broadcast %9 : vector<1x256xf32> to vector<4x256xf32>
    %11 = arith.mulf %8, %10 : vector<4x256xf32>
    %c0_6 = arith.constant 0 : index
    %c0_7 = arith.constant 0 : index
    %12 = vector.load %arg6[%c0_6, %c0_7] : memref<16x256xf32, #tpu.memory_space<vmem>>, vector<4x256xf32>
    tpu.vector_store %arg6[%c0_6, %c0_7], %11 {strides = array<i32>} : memref<16x256xf32, #tpu.memory_space<vmem>>, vector<4x256xf32>,
    %13 = vector.extract_strided_slice %5 {offsets = [4, 0], sizes = [4, 256], strides = [1, 1]} : vector<16x256xf32> to vector<4x256xf32>
    %14 = vector.extract_strided_slice %7 {offsets = [1, 0], sizes = [1, 256], strides = [1, 1]} : vector<2x256xf32> to vector<1x256xf32>
    %15 = vector.broadcast %14 : vector<1x256xf32> to vector<4x256xf32>
    %16 = arith.mulf %13, %15 : vector<4x256xf32>
    %c4 = arith.constant 4 : index
    %c0_8 = arith.constant 0 : index
    %17 = vector.load %arg6[%c4, %c0_8] : memref<16x256xf32, #tpu.memory_space<vmem>>, vector<4x256xf32>
    tpu.vector_store %arg6[%c4, %c0_8], %16 {strides = array<i32>} : memref<16x256xf32, #tpu.memory_space<vmem>>, vector<4x256xf32>,
    %c0_9 = arith.constant 0 : index
    %c0_10 = arith.constant 0 : index
    %18 = vector.load %arg6[%c0_9, %c0_10] : memref<16x256xf32, #tpu.memory_space<vmem>>, vector<16x256xf32>
    %c0_11 = arith.constant 0 : index
    %c0_12 = arith.constant 0 : index
    %c0_13 = arith.constant 0 : index
    %19 = vector.load %arg5[%c0_11, %c0_12, %c0_13] : memref<2x16x16xf32, #tpu.memory_space<vmem>>, vector<1x16x16xf32>
    %20 = vector.shape_cast %19 : vector<1x16x16xf32> to vector<16x16xf32>
    %cst_14 = arith.constant dense<0.000000e+00> : vector<16x16xf32>
    %21 = tpu.matmul %18, %18, %cst_14 {dimension_numbers = #tpu.dot_dimension_numbers<[1], [1], [0], [0], [0, 0, 1, 0], [], []>} : vector<16x256xf32>, vector<16x256xf32>, vector<16x16xf32> -> vector<16x16xf32>
    %22 = arith.addf %20, %21 : vector<16x16xf32>
    %c0_15 = arith.constant 0 : index
    %c0_16 = arith.constant 0 : index
    %c0_17 = arith.constant 0 : index
    %23 = vector.load %arg5[%c0_15, %c0_16, %c0_17] : memref<2x16x16xf32, #tpu.memory_space<vmem>>, vector<1x16x16xf32>
    %24 = vector.shape_cast %23 : vector<1x16x16xf32> to vector<16x16xf32>
    %25 = vector.shape_cast %22 : vector<16x16xf32> to vector<1x16x16xf32>
    tpu.vector_store %arg5[%c0_15, %c0_16, %c0_17], %25 {strides = array<i32>} : memref<2x16x16xf32, #tpu.memory_space<vmem>>, vector<1x16x16xf32>,
    %c1 = arith.constant 1 : index
    %c0_18 = arith.constant 0 : index
    %c0_19 = arith.constant 0 : index
    %26 = vector.load %arg3[%c1, %c0_18, %c0_19] : memref<2x2x256xf32, #tpu.memory_space<vmem>>, vector<1x2x256xf32>
    %27 = vector.shape_cast %26 : vector<1x2x256xf32> to vector<2x256xf32>
    %28 = vector.extract_strided_slice %5 {offsets = [0, 0], sizes = [4, 256], strides = [1, 1]} : vector<16x256xf32> to vector<4x256xf32>
    %29 = vector.extract_strided_slice %27 {offsets = [0, 0], sizes = [1, 256], strides = [1, 1]} : vector<2x256xf32> to vector<1x256xf32>
    %30 = vector.broadcast %29 : vector<1x256xf32> to vector<4x256xf32>
    %31 = arith.mulf %28, %30 : vector<4x256xf32>
    %c0_20 = arith.constant 0 : index
    %c0_21 = arith.constant 0 : index
    %32 = vector.load %arg6[%c0_20, %c0_21] : memref<16x256xf32, #tpu.memory_space<vmem>>, vector<4x256xf32>
    tpu.vector_store %arg6[%c0_20, %c0_21], %31 {strides = array<i32>} : memref<16x256xf32, #tpu.memory_space<vmem>>, vector<4x256xf32>,
    %33 = vector.extract_strided_slice %5 {offsets = [4, 0], sizes = [4, 256], strides = [1, 1]} : vector<16x256xf32> to vector<4x256xf32>
    %34 = vector.extract_strided_slice %27 {offsets = [1, 0], sizes = [1, 256], strides = [1, 1]} : vector<2x256xf32> to vector<1x256xf32>
    %35 = vector.broadcast %34 : vector<1x256xf32> to vector<4x256xf32>
    %36 = arith.mulf %33, %35 : vector<4x256xf32>
    %c4_22 = arith.constant 4 : index
    %c0_23 = arith.constant 0 : index
    %37 = vector.load %arg6[%c4_22, %c0_23] : memref<16x256xf32, #tpu.memory_space<vmem>>, vector<4x256xf32>
    tpu.vector_store %arg6[%c4_22, %c0_23], %36 {strides = array<i32>} : memref<16x256xf32, #tpu.memory_space<vmem>>, vector<4x256xf32>,
    %c0_24 = arith.constant 0 : index
    %c0_25 = arith.constant 0 : index
    %38 = vector.load %arg6[%c0_24, %c0_25] : memref<16x256xf32, #tpu.memory_space<vmem>>, vector<16x256xf32>
    %c1_26 = arith.constant 1 : index
    %c0_27 = arith.constant 0 : index
    %c0_28 = arith.constant 0 : index
    %39 = vector.load %arg5[%c1_26, %c0_27, %c0_28] : memref<2x16x16xf32, #tpu.memory_space<vmem>>, vector<1x16x16xf32>
    %40 = vector.shape_cast %39 : vector<1x16x16xf32> to vector<16x16xf32>
    %cst_29 = arith.constant dense<0.000000e+00> : vector<16x16xf32>
    %41 = tpu.matmul %38, %38, %cst_29 {dimension_numbers = #tpu.dot_dimension_numbers<[1], [1], [0], [0], [0, 0, 1, 0], [], []>} : vector<16x256xf32>, vector<16x256xf32>, vector<16x16xf32> -> vector<16x16xf32>
    %42 = arith.addf %40, %41 : vector<16x16xf32>
    %c1_30 = arith.constant 1 : index
    %c0_31 = arith.constant 0 : index
    %c0_32 = arith.constant 0 : index
    %43 = vector.load %arg5[%c1_30, %c0_31, %c0_32] : memref<2x16x16xf32, #tpu.memory_space<vmem>>, vector<1x16x16xf32>
    %44 = vector.shape_cast %43 : vector<1x16x16xf32> to vector<16x16xf32>
    %45 = vector.shape_cast %42 : vector<16x16xf32> to vector<1x16x16xf32>
    tpu.vector_store %arg5[%c1_30, %c0_31, %c0_32], %45 {strides = array<i32>} : memref<2x16x16xf32, #tpu.memory_space<vmem>>, vector<1x16x16xf32>,
    %c0_i32_33 = arith.constant 0 : i32
    %46 = arith.cmpi eq, %arg1, %c0_i32_33 : i32
    %47 = arith.extui %46 : i1 to i32
    %c0_i32_34 = arith.constant 0 : i32
    %48 = arith.cmpi ne, %47, %c0_i32_34 : i32
    scf.if %48 {
      %c0_35 = arith.constant 0 : index
      %c0_36 = arith.constant 0 : index
      %c0_37 = arith.constant 0 : index
      %49 = vector.load %arg5[%c0_35, %c0_36, %c0_37] : memref<2x16x16xf32, #tpu.memory_space<vmem>>, vector<2x16x16xf32>
      %c0_38 = arith.constant 0 : index
      %c0_39 = arith.constant 0 : index
      %c0_40 = arith.constant 0 : index
      %50 = vector.load %arg4[%c0_38, %c0_39, %c0_40] : memref<2x16x16xf32, #tpu.memory_space<vmem>>, vector<2x16x16xf32>
      tpu.vector_store %arg4[%c0_38, %c0_39, %c0_40], %49 {strides = array<i32>} : memref<2x16x16xf32, #tpu.memory_space<vmem>>, vector<2x16x16xf32>,
    } else {
    }
    return
  }
  func.func @transform_0(%arg0: i32, %arg1: i32) -> (i32, i32) {
    %c0_i32 = arith.constant 0 : i32
    %c0_i32_0 = arith.constant 0 : i32
    return %c0_i32, %arg1 : i32, i32
  }
  func.func @transform_1(%arg0: i32, %arg1: i32) -> (i32, i32, i32) {
    %c0_i32 = arith.constant 0 : i32
    %c0_i32_0 = arith.constant 0 : i32
    return %arg0, %c0_i32, %arg1 : i32, i32, i32
  }
  func.func @transform_2(%arg0: i32, %arg1: i32) -> (i32, i32, i32) {
    %c0_i32 = arith.constant 0 : i32
    %c0_i32_0 = arith.constant 0 : i32
    %c0_i32_1 = arith.constant 0 : i32
    return %arg0, %c0_i32, %c0_i32_0 : i32, i32, i32
  }
}

</mosaic_0001>

<llo_original>
// kernel: tpu_custom_call.1
$region0: #{tpu_custom_call.1}
  #allocation0 [shape = 'u32[]', space=smem, size = 0x4, offset = 0x4, fixed_abs, tag = 'smem constant byte address 0x4 - core index']
  #allocation1 [shape = 'u32[144,128]{1,0:T(1,128)}', space=vmem, size = 0x12000, scoped, tag = 'internal scratch']
  #allocation2 [shape = 'f32[2,16,16]{2,1,0:T(8,128)}', space=vmem, size = 0x4000, scoped, tag = 'scratch operand']
  #allocation3 [shape = 'f32[16,256]{1,0:T(8,128)}', space=vmem, size = 0x4000, scoped, tag = 'scratch operand']
  %s0 = inlined_call_operand.hbm [shape: f32[16,256], index: 0, kind: input, shape index: {}]
  %s1 = inlined_call_operand.hbm [shape: f32[2,2,256], index: 1, kind: input, shape index: {}]
  %s2 = inlined_call_operand.hbm [shape: f32[2,16,16], index: 2, kind: output, shape index: {}]
  %s3 = sld [smem:[#allocation0]]
  $region34: #{tpu_custom_call.1} parent=0
    _
  %s5 = ssub.s32 1, %s3
  %s6 = scalar_select 0, %s5, %s3
  $region1: #{tpu_custom_call.1} parent=0
    #allocation4 [shape = 'u8[16384]{0}', space=vmem, size = 0x4000, scoped, tag = 'input window, operand 0, single buffered']
    #allocation5 [shape = 's32[1]{0}', space=sflag, size = 0x4, scoped, tag = 'scoped memory for tpu_custom_call.1']
    #allocation6 [shape = 's32[1]{0}', space=sflag, size = 0x4, scoped, tag = 'scoped memory for tpu_custom_call.1']
    #allocation7 [shape = 'u8[4096]{0}', space=vmem, size = 0x1000, scoped, tag = 'input window, operand 1, single buffered']
    #allocation8 [shape = 's32[1]{0}', space=sflag, size = 0x4, scoped, tag = 'scoped memory for tpu_custom_call.1']
    #allocation9 [shape = 'u8[16384]{0}', space=vmem, size = 0x4000, scoped, tag = 'output window, operand 0, single buffered']
    %7 = vsyncpa [#allocation5], 0
    %8 = vsyncpa [#allocation8], 0
    %9 = vsyncpa [#allocation6], 0
    // Predicated region
    $region2: #{tpu_custom_call.1} parent=1 // pred_check
      _
    $region3: #{tpu_custom_call.1} parent=1 // pred_check_branch
      %11 = sbr.rel (0) target = $region5
    $region4: #{tpu_custom_call.1} parent=1 // pred_region
      %s13 = ssub.s32 512, 512
      %14 = vsyncadd [#allocation5], %s13
      %s15 = sshll.u32 [#allocation4], 4
      %s16 = int_to_ptr.vmem [resolvable:$true] %s15
      %21 = dma.hbm_to_vmem [thread:$0]  %s0, 512, %s16, [#allocation5], 256, 256, 16
    $region5: #{tpu_custom_call.1} parent=1 // pred_fallthru
      _
    // Predicated region
    $region6: #{tpu_custom_call.1} parent=1 // pred_check
      _
    $region7: #{tpu_custom_call.1} parent=1 // pred_check_branch
      %23 = sbr.rel (0) target = $region9
    $region8: #{tpu_custom_call.1} parent=1 // pred_region
      %s25 = ssub.s32 128, 128
      %26 = vsyncadd [#allocation8], %s25
      %s27 = sshll.u32 [#allocation7], 4
      %s28 = int_to_ptr.vmem [resolvable:$true] %s27
      %33 = dma.hbm_to_vmem [thread:$0]  %s1, 128, %s28, [#allocation8], 64, 64, 4
    $region9: #{tpu_custom_call.1} parent=1 // pred_fallthru
      _
    // Predicated region
    $region10: #{tpu_custom_call.1} parent=1 // pred_check
      _
    $region11: #{tpu_custom_call.1} parent=1 // pred_check_branch
      %35 = sbr.rel (0) target = $region13
    $region12: #{tpu_custom_call.1} parent=1 // pred_region
      %36 = dma.done [#allocation5], 512
    $region13: #{tpu_custom_call.1} parent=1 // pred_fallthru
      _
    // Predicated region
    $region14: #{tpu_custom_call.1} parent=1 // pred_check
      _
    $region15: #{tpu_custom_call.1} parent=1 // pred_check_branch
      %38 = sbr.rel (0) target = $region17
    $region16: #{tpu_custom_call.1} parent=1 // pred_region
      %39 = dma.done [#allocation8], 128
    $region17: #{tpu_custom_call.1} parent=1 // pred_fallthru
      _
    %p40 = scmp.eq.s32.totalorder 0, 0
    // Predicated region
    $region18: #{tpu_custom_call.1} parent=1 // pred_check
      %p41 = pneg %p40
    $region19: #{tpu_custom_call.1} parent=1 // pred_check_branch
      %43 = sbr.rel (%p41) target = $region21
    $region20: #{tpu_custom_call.1} parent=1 // pred_region
      %vm44 = vcmask 130048
      %45 = vst.msk [vmem:[#allocation2] sm:$0xff] %vm44, 0.0
      %46 = vst.msk [vmem:[#allocation2 + $0x8] sm:$0xff] %vm44, 0.0
      %47 = vst.msk [vmem:[#allocation2 + $0x10] sm:$0xff] %vm44, 0.0
      %48 = vst.msk [vmem:[#allocation2 + $0x18] sm:$0xff] %vm44, 0.0
    $region21: #{tpu_custom_call.1} parent=1 // pred_fallthru
      _
    %49 = vst [vmem:[#allocation3 + $0x10] sm:$0xff] 0.0
    %50 = vst [vmem:[#allocation3 + $0x18] sm:$0xff] 0.0
    %v51 = vld [vmem:[#allocation4] sm:$0xff]
    %v52 = vld [vmem:[#allocation4 + $0x8] sm:$0xff]
    %v53 = vld [vmem:[#allocation7] sm:$0xf]
    %v55 = vlaneseq
    %v56 = vshrl.u32 %v55, 7
    %v57 = vsub.s32 0, %v56
    %v58 = vrot.slane %v53, %v57
    %v59 = vlaneseq
    %v60 = vshrl.u32 %v59, 7
    %v61 = vsub.s32 2, %v60
    %v62 = vrot.slane %v53, %v61
    %v65 = vlaneseq
    %v66 = vshrl.u32 %v65, 7
    %v67 = vsub.s32 0, %v66
    %v68 = vrot.slane %v58, %v67
    %v69 = vlaneseq
    %v70 = vshrl.u32 %v69, 7
    %v71 = vsub.s32 0, %v70
    %v72 = vrot.slane %v62, %v71
    %v73 = vmul.f32 %v51, %v68
    %v74 = vmul.f32 %v52, %v72
    %75 = vst [vmem:[#allocation3] sm:$0xf] %v73
    %76 = vst [vmem:[#allocation3 + $0x8] sm:$0xf] %v74
    %v77 = vlaneseq
    %v78 = vshrl.u32 %v77, 7
    %v79 = vsub.s32 1, %v78
    %v80 = vrot.slane %v53, %v79
    %v81 = vlaneseq
    %v82 = vshrl.u32 %v81, 7
    %v83 = vsub.s32 3, %v82
    %v84 = vrot.slane %v53, %v83
    %v87 = vlaneseq
    %v88 = vshrl.u32 %v87, 7
    %v89 = vsub.s32 1, %v88
    %v90 = vrot.slane %v80, %v89
    %v91 = vlaneseq
    %v92 = vshrl.u32 %v91, 7
    %v93 = vsub.s32 1, %v92
    %v94 = vrot.slane %v84, %v93
    %v95 = vmul.f32 %v51, %v90
    %v96 = vmul.f32 %v52, %v94
    %97 = vst [vmem:[#allocation3] sm:$0xf0] %v95
    %98 = vst [vmem:[#allocation3 + $0x8] sm:$0xf0] %v96
    %v99 = vld [vmem:[#allocation3] sm:$0xff]
    %v100 = vld [vmem:[#allocation3 + $0x8] sm:$0xff]
    %v101 = vld [vmem:[#allocation3 + $0x10] sm:$0xff]
    %v102 = vld [vmem:[#allocation3 + $0x18] sm:$0xff]
    %v103 = vld [vmem:[#allocation2] sm:$0xff]
    %v104 = vld [vmem:[#allocation2 + $0x8] sm:$0xff]
    %105 = vmatprep.subr.mxu0 0.0
    %106 = vmatpush1.xpose.msra.mxu0 0.0
    %107 = vmatprep.subr.mxu0 0.0
    %108 = vmatpush1.xpose.msra.mxu0 0.0
    %109 = vmatprep.subr.mxu0 0.0
    %110 = vmatpush1.xpose.msra.mxu0 0.0
    %111 = vmatprep.subr.mxu0 0.0
    %112 = vmatpush1.xpose.msra.mxu0 0.0
    %113 = vmatprep.subr.mxu0 0.0
    %114 = vmatpush1.xpose.msra.mxu0 0.0
    %115 = vmatprep.subr.mxu0 0.0
    %116 = vmatpush1.xpose.msra.mxu0 0.0
    %117 = vmatprep.subr.mxu0 0.0
    %118 = vmatpush1.xpose.msra.mxu0 0.0
    %119 = vmatprep.subr.mxu0 0.0
    %120 = vmatpush1.xpose.msra.mxu0 0.0
    %121 = vmatprep.subr.mxu0 0.0
    %122 = vmatpush1.xpose.msra.mxu0 0.0
    %123 = vmatprep.subr.mxu0 0.0
    %124 = vmatpush1.xpose.msra.mxu0 0.0
    %125 = vmatprep.subr.mxu0 0.0
    %126 = vmatpush1.xpose.msra.mxu0 0.0
    %127 = vmatprep.subr.mxu0 0.0
    %128 = vmatpush1.xpose.msra.mxu0 0.0
    %129 = vmatprep.subr.mxu0 0.0
    %130 = vmatpush1.xpose.msra.mxu0 0.0
    %131 = vmatprep.subr.mxu0 0.0
    %132 = vmatpush1.xpose.msra.mxu0 0.0
    %133 = vmatprep.subr.mxu0 %v102
    %134 = vmatpush1.xpose.msra.mxu0 %v101
    %135 = vmatprep.subr.mxu0 %v100
    %136 = vmatpush1.xpose.msra.mxu0 %v99
    %137 = vmatprep.subr.mxu0 0.0
    %138 = vmatpush2.xpose.msra.mxu0 0.0
    %139 = vmatprep.subr.mxu0 0.0
    %140 = vmatpush2.xpose.msra.mxu0 0.0
    %141 = vmatprep.subr.mxu0 0.0
    %142 = vmatpush2.xpose.msra.mxu0 0.0
    %143 = vmatprep.subr.mxu0 0.0
    %144 = vmatpush2.xpose.msra.mxu0 0.0
    %145 = vmatprep.subr.mxu0 0.0
    %146 = vmatpush2.xpose.msra.mxu0 0.0
    %147 = vmatprep.subr.mxu0 0.0
    %148 = vmatpush2.xpose.msra.mxu0 0.0
    %149 = vmatprep.subr.mxu0 0.0
    %150 = vmatpush2.xpose.msra.mxu0 0.0
    %151 = vmatprep.subr.mxu0 0.0
    %152 = vmatpush2.xpose.msra.mxu0 0.0
    %153 = vmatprep.subr.mxu0 0.0
    %154 = vmatpush2.xpose.msra.mxu0 0.0
    %155 = vmatprep.subr.mxu0 0.0
    %156 = vmatpush2.xpose.msra.mxu0 0.0
    %157 = vmatprep.subr.mxu0 0.0
    %158 = vmatpush2.xpose.msra.mxu0 0.0
    %159 = vmatprep.subr.mxu0 0.0
    %160 = vmatpush2.xpose.msra.mxu0 0.0
    %161 = vmatprep.subr.mxu0 0.0
    %162 = vmatpush2.xpose.msra.mxu0 0.0
    %163 = vmatprep.subr.mxu0 0.0
    %164 = vmatpush2.xpose.msra.mxu0 0.0
    %165 = vmatprep.subr.mxu0 0.0
    %166 = vmatpush2.xpose.msra.mxu0 0.0
    %167 = vmatprep.subr.mxu0 0.0
    %168 = vmatpush2.xpose.msra.mxu0 0.0
    %169 = vmatprep.mubr.f32.mxu0 %v100
    %170 = vmatmul.mubr.f32.gmra.mxu0 %v99
    %v171 = vpop.f32.mrf.mxu0
    %v172 = vadd.f32 0.0, %v171
    %v173 = vpop.f32.mrf.mxu0
    %174 = vmatprep.mubr.f32.mxu0 %v102
    %175 = vmatmul.mubr.f32.gmra.mxu0 %v101
    %v176 = vpop.f32.mrf.mxu0
    %v177 = vadd.f32 0.0, %v176
    %v178 = vpop.f32.mrf.mxu0
    %179 = vdwg.mxu0
    %v180 = vadd.f32 %v103, %v172
    %v181 = vadd.f32 %v104, %v177
    %vm182 = vcmask 130048
    %183 = vst.msk [vmem:[#allocation2] sm:$0xff] %vm182, %v180
    %184 = vst.msk [vmem:[#allocation2 + $0x8] sm:$0xff] %vm182, %v181
    %s185 = scalar_lea.vmem [#allocation7], 4
    %v186 = vld [vmem:[%s185] sm:$0xf]
    %v188 = vlaneseq
    %v189 = vshrl.u32 %v188, 7
    %v190 = vsub.s32 0, %v189
    %v191 = vrot.slane %v186, %v190
    %v192 = vlaneseq
    %v193 = vshrl.u32 %v192, 7
    %v194 = vsub.s32 2, %v193
    %v195 = vrot.slane %v186, %v194
    %v198 = vlaneseq
    %v199 = vshrl.u32 %v198, 7
    %v200 = vsub.s32 0, %v199
    %v201 = vrot.slane %v191, %v200
    %v202 = vlaneseq
    %v203 = vshrl.u32 %v202, 7
    %v204 = vsub.s32 0, %v203
    %v205 = vrot.slane %v195, %v204
    %v206 = vmul.f32 %v51, %v201
    %v207 = vmul.f32 %v52, %v205
    %208 = vst [vmem:[#allocation3] sm:$0xf] %v206
    %209 = vst [vmem:[#allocation3 + $0x8] sm:$0xf] %v207
    %v210 = vlaneseq
    %v211 = vshrl.u32 %v210, 7
    %v212 = vsub.s32 1, %v211
    %v213 = vrot.slane %v186, %v212
    %v214 = vlaneseq
    %v215 = vshrl.u32 %v214, 7
    %v216 = vsub.s32 3, %v215
    %v217 = vrot.slane %v186, %v216
    %v220 = vlaneseq
    %v221 = vshrl.u32 %v220, 7
    %v222 = vsub.s32 1, %v221
    %v223 = vrot.slane %v213, %v222
    %v224 = vlaneseq
    %v225 = vshrl.u32 %v224, 7
    %v226 = vsub.s32 1, %v225
    %v227 = vrot.slane %v217, %v226
    %v228 = vmul.f32 %v51, %v223
    %v229 = vmul.f32 %v52, %v227
    %230 = vst [vmem:[#allocation3] sm:$0xf0] %v228
    %231 = vst [vmem:[#allocation3 + $0x8] sm:$0xf0] %v229
    %v232 = vld [vmem:[#allocation3] sm:$0xff]
    %v233 = vld [vmem:[#allocation3 + $0x8] sm:$0xff]
    %v234 = vld [vmem:[#allocation3 + $0x10] sm:$0xff]
    %v235 = vld [vmem:[#allocation3 + $0x18] sm:$0xff]
    %s236 = scalar_lea.vmem [#allocation2], 16
    %v237 = vld [vmem:[%s236] sm:$0xff]
    %v238 = vld [vmem:[%s236 + $0x8] sm:$0xff]
    %239 = vmatprep.subr.mxu0 0.0
    %240 = vmatpush1.xpose.msra.mxu0 0.0
    %241 = vmatprep.subr.mxu0 0.0
    %242 = vmatpush1.xpose.msra.mxu0 0.0
    %243 = vmatprep.subr.mxu0 0.0
    %244 = vmatpush1.xpose.msra.mxu0 0.0
    %245 = vmatprep.subr.mxu0 0.0
    %246 = vmatpush1.xpose.msra.mxu0 0.0
    %247 = vmatprep.subr.mxu0 0.0
    %248 = vmatpush1.xpose.msra.mxu0 0.0
    %249 = vmatprep.subr.mxu0 0.0
    %250 = vmatpush1.xpose.msra.mxu0 0.0
    %251 = vmatprep.subr.mxu0 0.0
    %252 = vmatpush1.xpose.msra.mxu0 0.0
    %253 = vmatprep.subr.mxu0 0.0
    %254 = vmatpush1.xpose.msra.mxu0 0.0
    %255 = vmatprep.subr.mxu0 0.0
    %256 = vmatpush1.xpose.msra.mxu0 0.0
    %257 = vmatprep.subr.mxu0 0.0
    %258 = vmatpush1.xpose.msra.mxu0 0.0
    %259 = vmatprep.subr.mxu0 0.0
    %260 = vmatpush1.xpose.msra.mxu0 0.0
    %261 = vmatprep.subr.mxu0 0.0
    %262 = vmatpush1.xpose.msra.mxu0 0.0
    %263 = vmatprep.subr.mxu0 0.0
    %264 = vmatpush1.xpose.msra.mxu0 0.0
    %265 = vmatprep.subr.mxu0 0.0
    %266 = vmatpush1.xpose.msra.mxu0 0.0
    %267 = vmatprep.subr.mxu0 %v235
    %268 = vmatpush1.xpose.msra.mxu0 %v234
    %269 = vmatprep.subr.mxu0 %v233
    %270 = vmatpush1.xpose.msra.mxu0 %v232
    %271 = vmatprep.subr.mxu0 0.0
    %272 = vmatpush2.xpose.msra.mxu0 0.0
    %273 = vmatprep.subr.mxu0 0.0
    %274 = vmatpush2.xpose.msra.mxu0 0.0
    %275 = vmatprep.subr.mxu0 0.0
    %276 = vmatpush2.xpose.msra.mxu0 0.0
    %277 = vmatprep.subr.mxu0 0.0
    %278 = vmatpush2.xpose.msra.mxu0 0.0
    %279 = vmatprep.subr.mxu0 0.0
    %280 = vmatpush2.xpose.msra.mxu0 0.0
    %281 = vmatprep.subr.mxu0 0.0
    %282 = vmatpush2.xpose.msra.mxu0 0.0
    %283 = vmatprep.subr.mxu0 0.0
    %284 = vmatpush2.xpose.msra.mxu0 0.0
    %285 = vmatprep.subr.mxu0 0.0
    %286 = vmatpush2.xpose.msra.mxu0 0.0
    %287 = vmatprep.subr.mxu0 0.0
    %288 = vmatpush2.xpose.msra.mxu0 0.0
    %289 = vmatprep.subr.mxu0 0.0
    %290 = vmatpush2.xpose.msra.mxu0 0.0
    %291 = vmatprep.subr.mxu0 0.0
    %292 = vmatpush2.xpose.msra.mxu0 0.0
    %293 = vmatprep.subr.mxu0 0.0
    %294 = vmatpush2.xpose.msra.mxu0 0.0
    %295 = vmatprep.subr.mxu0 0.0
    %296 = vmatpush2.xpose.msra.mxu0 0.0
    %297 = vmatprep.subr.mxu0 0.0
    %298 = vmatpush2.xpose.msra.mxu0 0.0
    %299 = vmatprep.subr.mxu0 0.0
    %300 = vmatpush2.xpose.msra.mxu0 0.0
    %301 = vmatprep.subr.mxu0 0.0
    %302 = vmatpush2.xpose.msra.mxu0 0.0
    %303 = vmatprep.mubr.f32.mxu0 %v233
    %304 = vmatmul.mubr.f32.gmra.mxu0 %v232
    %v305 = vpop.f32.mrf.mxu0
    %v306 = vadd.f32 0.0, %v305
    %v307 = vpop.f32.mrf.mxu0
    %308 = vmatprep.mubr.f32.mxu0 %v235
    %309 = vmatmul.mubr.f32.gmra.mxu0 %v234
    %v310 = vpop.f32.mrf.mxu0
    %v311 = vadd.f32 0.0, %v310
    %v312 = vpop.f32.mrf.mxu0
    %313 = vdwg.mxu0
    %v314 = vadd.f32 %v237, %v306
    %v315 = vadd.f32 %v238, %v311
    %316 = vst.msk [vmem:[%s236] sm:$0xff] %vm182, %v314
    %317 = vst.msk [vmem:[%s236 + $0x8] sm:$0xff] %vm182, %v315
    // Predicated region
    $region22: #{tpu_custom_call.1} parent=1 // pred_check
      %p318 = pneg %p40
    $region23: #{tpu_custom_call.1} parent=1 // pred_check_branch
      %320 = sbr.rel (%p318) target = $region25
    $region24: #{tpu_custom_call.1} parent=1 // pred_region
      %v321 = vld [vmem:[#allocation2] sm:$0xff]
      %v322 = vld [vmem:[#allocation2 + $0x8] sm:$0xff]
      %v323 = vld [vmem:[#allocation2 + $0x10] sm:$0xff]
      %v324 = vld [vmem:[#allocation2 + $0x18] sm:$0xff]
      %325 = vst.msk [vmem:[#allocation9] sm:$0xff] %vm182, %v321
      %326 = vst.msk [vmem:[#allocation9 + $0x8] sm:$0xff] %vm182, %v322
      %327 = vst.msk [vmem:[#allocation9 + $0x10] sm:$0xff] %vm182, %v323
      %328 = vst.msk [vmem:[#allocation9 + $0x18] sm:$0xff] %vm182, %v324
    $region25: #{tpu_custom_call.1} parent=1 // pred_fallthru
      _
    // Predicated region
    $region26: #{tpu_custom_call.1} parent=1 // pred_check
      _
    $region27: #{tpu_custom_call.1} parent=1 // pred_check_branch
      %330 = sbr.rel (0) target = $region29
    $region28: #{tpu_custom_call.1} parent=1 // pred_region
      %s332 = ssub.s32 512, 512
      %333 = vsyncadd [#allocation6], %s332
      %s334 = sshll.u32 [#allocation9], 4
      %s335 = int_to_ptr.vmem [resolvable:$true] %s334
      %340 = dma.vmem_to_hbm [thread:$0]  %s335, 512, %s2, [#allocation6], 128, 128, 8
    $region29: #{tpu_custom_call.1} parent=1 // pred_fallthru
      _
    // Predicated region
    $region30: #{tpu_custom_call.1} parent=1 // pred_check
      _
    $region31: #{tpu_custom_call.1} parent=1 // pred_check_branch
      %342 = sbr.rel (0) target = $region33
    $region32: #{tpu_custom_call.1} parent=1 // pred_region
      %343 = dma.done [#allocation6], 512
    $region33: #{tpu_custom_call.1} parent=1 // pred_fallthru
      _
    %344 = vsyncpa [#allocation5], 1
    %345 = vsyncpa [#allocation8], 1
    %346 = vsyncpa [#allocation6], 1

</llo_original>
